<compile_context>
chip_gen: v5e
topology: v5e:2x2
jax: 0.10.0
libtpu: 0.0.40
codegen_flags: <defaults>
</compile_context>

<pallas_src>
import functools

import jax
import jax.numpy as jnp
from jax import lax
from jax.experimental import pallas as pl
from jax.experimental.pallas import tpu as pltpu

LANE = 128      # lane tile (fixed by hardware)
TM_MAX = 1024   # max rows per grid step (~512 KiB f32 per input block)


def _mixed_loss_kernel(x_ref, t_ref, out_ref,
                       acc_f, acc_i, acc_s, acc_t,
                       *, gamma, n_valid, binary_fastpath):
    o = pl.program_id(0)            # parallel (outer) axis
    i = pl.program_id(1)            # reduction (inner) axis
    n_inner = pl.num_programs(1)
    tm = x_ref.shape[0]

    @pl.when(i == 0)
    def _init():
        acc_f[...] = jnp.zeros_like(acc_f)
        acc_i[...] = jnp.zeros_like(acc_i)
        acc_s[...] = jnp.zeros_like(acc_s)
        acc_t[...] = jnp.zeros_like(acc_t)

    # Global element index of every slot in this tile. The index_map clamps the
    # DMA so it always reads in-bounds data; the *unclamped* index is used here
    # so overshoot / ragged-tail slots are masked out.
    blk = o * n_inner + i
    row = lax.broadcasted_iota(jnp.int32, (tm, LANE), 0)
    col = lax.broadcasted_iota(jnp.int32, (tm, LANE), 1)
    idx = (blk * tm + row) * LANE + col
    valid = idx < n_valid
    mask = valid.astype(jnp.float32)

    # Mask BEFORE any transcendental so garbage in padded regions can't produce
    # NaN/Inf that would poison the sums.
    x = jnp.where(valid, x_ref[...].astype(jnp.float32), 0.0)
    t = jnp.where(valid, t_ref[...].astype(jnp.float32), 0.0)

    # Stable BCE-with-logits, identical to the PyTorch formula:
    #   x - x*t + max(-x,0) + log(exp(-max_val) + exp(-x - max_val))
    #     == x - x*t + max(-x,0) + log1p(exp(-|x|))
    e = jnp.exp(-jnp.abs(x))                                   # exp(-|x|) (EUP)
    bce = x - x * t + jnp.maximum(-x, 0.0) + jnp.log1p(e)

    # sigmoid(x), reusing e (no second exp).
    s = jnp.where(x >= 0.0, 1.0, e) / (1.0 + e)

    if binary_fastpath:
        # For t in {0,1}: exp(gamma*logsigmoid(-x*(2t-1))) == (s + t - 2ts)**gamma.
        p = s + t - 2.0 * t * s
        g = int(round(gamma))
        if g == 0:
            mod = jnp.ones_like(p)
        else:
            mod = p
            for _ in range(g - 1):
                mod = mod * p
    else:
        # Generic path (non-binary targets / non-integer gamma).
        z = -x * (t * 2.0 - 1.0)
        invprobs = jnp.minimum(z, 0.0) - jnp.log1p(jnp.exp(-jnp.abs(z)))
        mod = jnp.exp(invprobs * gamma)

    focal = mod * bce * mask
    sig = s * mask          # t is already zeroed where invalid

    acc_f[...] += focal
    acc_i[...] += sig * t
    acc_s[...] += sig
    acc_t[...] += t

    @pl.when(i == n_inner - 1)
    def _finalize():
        pf = jnp.sum(acc_f[...], axis=0, keepdims=True)   # (1, 128)
        pi = jnp.sum(acc_i[...], axis=0, keepdims=True)
        ps = jnp.sum(acc_s[...], axis=0, keepdims=True)
        pt = jnp.sum(acc_t[...], axis=0, keepdims=True)
        out_ref[...] = jnp.concatenate([pf, pi, ps, pt], axis=0)[None, :, :]


def mixed_loss(x, target, *, alpha, gamma, assume_binary_target=True):
    """MixedLoss.forward: alpha * FocalLoss(gamma)(x, t) - log(dice_loss(x, t))."""
    assert x.shape == target.shape, "Target size must be the same as input size"
    n_valid = int(x.size)

    # Lane-major (rows, 128) view; rows rounded up to a multiple of 8 so the
    # sublane tiling always works. When numel % 1024 == 0 this is a free
    # reshape -- no padded HBM copy.
    rows = pl.cdiv(n_valid, LANE)
    rows = pl.cdiv(rows, 8) * 8
    n_pad = rows * LANE - n_valid

    def as_slab(a):
        flat = jnp.reshape(a, (-1,))
        if n_pad:
            flat = jnp.pad(flat, (0, n_pad))
        return jnp.reshape(flat, (rows, LANE))

    x2d = as_slab(x)
    t2d = as_slab(target)   # kept in its source dtype; cast happens in-kernel

    tm = min(TM_MAX, rows)
    n_blocks = pl.cdiv(rows, tm)
    n_outer = 2 if n_blocks >= 2 else 1   # lets both v7x TensorCores participate
    n_inner = pl.cdiv(n_blocks, n_outer)

    def in_map(o, i):
        # Clamp so the (possible) overshoot step still DMAs in-bounds data; its
        # contribution is masked out in the kernel via the unclamped index.
        return (jnp.minimum(o * n_inner + i, n_blocks - 1), 0)

    binary_fastpath = (bool(assume_binary_target)
                       and float(gamma) >= 0.0
                       and float(gamma).is_integer())

    kernel = functools.partial(
        _mixed_loss_kernel,
        gamma=float(gamma),
        n_valid=n_valid,
        binary_fastpath=binary_fastpath,
    )

    partials = pl.pallas_call(
        kernel,
        out_shape=jax.ShapeDtypeStruct((n_outer, 4, LANE), jnp.float32),
        grid_spec=pltpu.PrefetchScalarGridSpec(
            num_scalar_prefetch=0,
            grid=(n_outer, n_inner),
            in_specs=[
                pl.BlockSpec((tm, LANE), in_map),
                pl.BlockSpec((tm, LANE), in_map),
            ],
            out_specs=pl.BlockSpec((1, 4, LANE), lambda o, i: (o, 0, 0)),
            scratch_shapes=[pltpu.VMEM((tm, LANE), jnp.float32)] * 4,
        ),
        compiler_params=pltpu.CompilerParams(
            dimension_semantics=("parallel", "arbitrary"),
        ),
    )(x2d, t2d)

    sums = jnp.sum(partials, axis=(0, 2))             # (4,)
    focal_sum, intersection, input_sum, target_sum = sums[0], sums[1], sums[2], sums[3]

    focal_mean = focal_sum / jnp.float32(n_valid)
    smooth = 1.0
    dice = (2.0 * intersection + smooth) / (input_sum + target_sum + smooth)
    loss = alpha * focal_mean - jnp.log(dice)
    return loss  # .mean() of a scalar is the scalar itself


def _reference(x, t, alpha, gamma):
    x = x.astype(jnp.float32)
    t = t.astype(jnp.float32)
    max_val = jnp.maximum(-x, 0.0)
    bce = x - x * t + max_val + jnp.log(jnp.exp(-max_val) + jnp.exp(-x - max_val))
    invprobs = jax.nn.log_sigmoid(-x * (t * 2.0 - 1.0))
    focal = jnp.mean(jnp.exp(invprobs * gamma) * bce)
    sig = jax.nn.sigmoid(x).reshape(-1)
    tf = t.reshape(-1)
    dice = (2.0 * jnp.sum(sig * tf) + 1.0) / (jnp.sum(sig) + jnp.sum(tf) + 1.0)
    return alpha * focal - jnp.log(dice)


if __name__ == "__main__":
    # MixedLoss(alpha, gamma) hyper-parameters, deterministic.
    alpha, gamma = 10.0, 2.0

    key = jax.random.PRNGKey(0)
    k1, k2 = jax.random.split(key)
    # NCHW, same convention as the PyTorch module's segmentation use-case.
    x = jax.random.normal(k1, (2, 4, 16, 16), dtype=jnp.float32)                 # logits
    target = (jax.random.uniform(k2, (2, 4, 16, 16)) > 0.5).astype(jnp.float32)  # binary mask

    loss = mixed_loss(x, target, alpha=alpha, gamma=gamma)
    loss = jax.block_until_ready(loss)

    ref = _reference(x, target, alpha, gamma)
    assert jnp.allclose(loss, ref, rtol=1e-4, atol=1e-4), (loss, ref)

    print("KERNEL_OK")
</pallas_src>

<mosaic_0001>
module attributes {stable_mosaic.version = 11 : i64} {
  func.func @_mixed_loss_kernel(%arg0: i32, %arg1: i32, %arg2: memref<16x128xf32, #tpu.memory_space<vmem>>, %arg3: memref<16x128xf32, #tpu.memory_space<vmem>>, %arg4: memref<1x4x128xf32, #tpu.memory_space<vmem>>, %arg5: memref<16x128xf32, #tpu.memory_space<vmem>>, %arg6: memref<16x128xf32, #tpu.memory_space<vmem>>, %arg7: memref<16x128xf32, #tpu.memory_space<vmem>>, %arg8: memref<16x128xf32, #tpu.memory_space<vmem>>) attributes {dimension_semantics = [#tpu.dimension_semantics<parallel>, #tpu.dimension_semantics<arbitrary>], iteration_bounds = array<i64: 1, 1>, scalar_prefetch = 0 : i64, scratch_operands = 4 : i64, tpu.core_type = #tpu.core_type<tc>, window_params = [{transform_indices = @transform_0, window_bounds = array<i64: 16, 128>}, {transform_indices = @transform_1, window_bounds = array<i64: 16, 128>}, {transform_indices = @transform_2, window_bounds = array<i64: 1, 4, 128>}]} {
    %c0_i32 = arith.constant 0 : i32
    %0 = arith.cmpi eq, %arg1, %c0_i32 : i32
    %1 = arith.extui %0 : i1 to i32
    %c0_i32_0 = arith.constant 0 : i32
    %2 = arith.cmpi ne, %1, %c0_i32_0 : i32
    scf.if %2 {
      %cst_30 = arith.constant 0.000000e+00 : f32
      %68 = vector.broadcast %cst_30 : f32 to vector<16x128xf32>
      %c0_31 = arith.constant 0 : index
      %c0_32 = arith.constant 0 : index
      %69 = vector.load %arg5[%c0_31, %c0_32] : memref<16x128xf32, #tpu.memory_space<vmem>>, vector<16x128xf32>
      tpu.vector_store %arg5[%c0_31, %c0_32], %68 {strides = array<i32>} : memref<16x128xf32, #tpu.memory_space<vmem>>, vector<16x128xf32>,
      %cst_33 = arith.constant 0.000000e+00 : f32
      %70 = vector.broadcast %cst_33 : f32 to vector<16x128xf32>
      %c0_34 = arith.constant 0 : index
      %c0_35 = arith.constant 0 : index
      %71 = vector.load %arg6[%c0_34, %c0_35] : memref<16x128xf32, #tpu.memory_space<vmem>>, vector<16x128xf32>
      tpu.vector_store %arg6[%c0_34, %c0_35], %70 {strides = array<i32>} : memref<16x128xf32, #tpu.memory_space<vmem>>, vector<16x128xf32>,
      %cst_36 = arith.constant 0.000000e+00 : f32
      %72 = vector.broadcast %cst_36 : f32 to vector<16x128xf32>
      %c0_37 = arith.constant 0 : index
      %c0_38 = arith.constant 0 : index
      %73 = vector.load %arg7[%c0_37, %c0_38] : memref<16x128xf32, #tpu.memory_space<vmem>>, vector<16x128xf32>
      tpu.vector_store %arg7[%c0_37, %c0_38], %72 {strides = array<i32>} : memref<16x128xf32, #tpu.memory_space<vmem>>, vector<16x128xf32>,
      %cst_39 = arith.constant 0.000000e+00 : f32
      %74 = vector.broadcast %cst_39 : f32 to vector<16x128xf32>
      %c0_40 = arith.constant 0 : index
      %c0_41 = arith.constant 0 : index
      %75 = vector.load %arg8[%c0_40, %c0_41] : memref<16x128xf32, #tpu.memory_space<vmem>>, vector<16x128xf32>
      tpu.vector_store %arg8[%c0_40, %c0_41], %74 {strides = array<i32>} : memref<16x128xf32, #tpu.memory_space<vmem>>, vector<16x128xf32>,
    } else {
    }
    %c1_i32 = arith.constant 1 : i32
    %3 = arith.muli %arg0, %c1_i32 : i32
    %4 = arith.addi %3, %arg1 : i32
    %5 = tpu.iota {dimensions = array<i32: 0>} : vector<16x128xi32>
    %6 = tpu.iota {dimensions = array<i32: 1>} : vector<16x128xi32>
    %c16_i32 = arith.constant 16 : i32
    %7 = arith.muli %4, %c16_i32 : i32
    %8 = vector.broadcast %7 : i32 to vector<16x128xi32>
    %9 = arith.addi %8, %5 : vector<16x128xi32>
    %c128_i32 = arith.constant 128 : i32
    %10 = vector.broadcast %c128_i32 : i32 to vector<16x128xi32>
    %11 = arith.muli %9, %10 : vector<16x128xi32>
    %12 = arith.addi %11, %6 : vector<16x128xi32>
    %c2048_i32 = arith.constant 2048 : i32
    %13 = vector.broadcast %c2048_i32 : i32 to vector<16x128xi32>
    %14 = arith.cmpi slt, %12, %13 : vector<16x128xi32>
    %15 = arith.extui %14 : vector<16x128xi1> to vector<16x128xi32>
    %16 = arith.sitofp %15 : vector<16x128xi32> to vector<16x128xf32>
    %c0 = arith.constant 0 : index
    %c0_1 = arith.constant 0 : index
    %17 = vector.load %arg2[%c0, %c0_1] : memref<16x128xf32, #tpu.memory_space<vmem>>, vector<16x128xf32>
    %cst = arith.constant 0.000000e+00 : f32
    %18 = vector.broadcast %cst : f32 to vector<16x128xf32>
    %19 = arith.select %14, %17, %18 : vector<16x128xi1>, vector<16x128xf32>
    %c0_2 = arith.constant 0 : index
    %c0_3 = arith.constant 0 : index
    %20 = vector.load %arg3[%c0_2, %c0_3] : memref<16x128xf32, #tpu.memory_space<vmem>>, vector<16x128xf32>
    %cst_4 = arith.constant 0.000000e+00 : f32
    %21 = vector.broadcast %cst_4 : f32 to vector<16x128xf32>
    %22 = arith.select %14, %20, %21 : vector<16x128xi1>, vector<16x128xf32>
    %23 = math.absf %19 : vector<16x128xf32>
    %cst_5 = arith.constant 0.000000e+00 : f32
    %24 = vector.broadcast %cst_5 : f32 to vector<16x128xf32>
    %25 = arith.subf %24, %23 : vector<16x128xf32>
    %26 = math.exp %25 : vector<16x128xf32>
    %27 = arith.mulf %19, %22 : vector<16x128xf32>
    %28 = arith.subf %19, %27 : vector<16x128xf32>
    %cst_6 = arith.constant 0.000000e+00 : f32
    %29 = vector.broadcast %cst_6 : f32 to vector<16x128xf32>
    %30 = arith.subf %29, %19 : vector<16x128xf32>
    %cst_7 = arith.constant 0.000000e+00 : f32
    %31 = vector.broadcast %cst_7 : f32 to vector<16x128xf32>
    %32 = arith.maximumf %30, %31 : vector<16x128xf32>
    %33 = arith.addf %28, %32 : vector<16x128xf32>
    %34 = math.log1p %26 : vector<16x128xf32>
    %35 = arith.addf %33, %34 : vector<16x128xf32>
    %cst_8 = arith.constant 0.000000e+00 : f32
    %36 = vector.broadcast %cst_8 : f32 to vector<16x128xf32>
    %37 = arith.cmpf oge, %19, %36 : vector<16x128xf32>
    %cst_9 = arith.constant 1.000000e+00 : f32
    %38 = vector.broadcast %cst_9 : f32 to vector<16x128xf32>
    %39 = arith.select %37, %38, %26 : vector<16x128xi1>, vector<16x128xf32>
    %cst_10 = arith.constant 1.000000e+00 : f32
    %40 = vector.broadcast %cst_10 : f32 to vector<16x128xf32>
    %41 = arith.addf %40, %26 : vector<16x128xf32>
    %42 = arith.divf %39, %41 : vector<16x128xf32>
    %43 = arith.addf %42, %22 : vector<16x128xf32>
    %cst_11 = arith.constant 2.000000e+00 : f32
    %44 = vector.broadcast %cst_11 : f32 to vector<16x128xf32>
    %45 = arith.mulf %44, %22 : vector<16x128xf32>
    %46 = arith.mulf %45, %42 : vector<16x128xf32>
    %47 = arith.subf %43, %46 : vector<16x128xf32>
    %48 = arith.mulf %47, %47 : vector<16x128xf32>
    %49 = arith.mulf %48, %35 : vector<16x128xf32>
    %50 = arith.mulf %49, %16 : vector<16x128xf32>
    %51 = arith.mulf %42, %16 : vector<16x128xf32>
    %c0_12 = arith.constant 0 : index
    %c0_13 = arith.constant 0 : index
    %52 = vector.load %arg5[%c0_12, %c0_13] : memref<16x128xf32, #tpu.memory_space<vmem>>, vector<16x128xf32>
    %53 = arith.addf %52, %50 : vector<16x128xf32>
    %c0_14 = arith.constant 0 : index
    %c0_15 = arith.constant 0 : index
    %54 = vector.load %arg5[%c0_14, %c0_15] : memref<16x128xf32, #tpu.memory_space<vmem>>, vector<16x128xf32>
    tpu.vector_store %arg5[%c0_14, %c0_15], %53 {strides = array<i32>} : memref<16x128xf32, #tpu.memory_space<vmem>>, vector<16x128xf32>,
    %c0_16 = arith.constant 0 : index
    %c0_17 = arith.constant 0 : index
    %55 = vector.load %arg6[%c0_16, %c0_17] : memref<16x128xf32, #tpu.memory_space<vmem>>, vector<16x128xf32>
    %56 = arith.mulf %51, %22 : vector<16x128xf32>
    %57 = arith.addf %55, %56 : vector<16x128xf32>
    %c0_18 = arith.constant 0 : index
    %c0_19 = arith.constant 0 : index
    %58 = vector.load %arg6[%c0_18, %c0_19] : memref<16x128xf32, #tpu.memory_space<vmem>>, vector<16x128xf32>
    tpu.vector_store %arg6[%c0_18, %c0_19], %57 {strides = array<i32>} : memref<16x128xf32, #tpu.memory_space<vmem>>, vector<16x128xf32>,
    %c0_20 = arith.constant 0 : index
    %c0_21 = arith.constant 0 : index
    %59 = vector.load %arg7[%c0_20, %c0_21] : memref<16x128xf32, #tpu.memory_space<vmem>>, vector<16x128xf32>
    %60 = arith.addf %59, %51 : vector<16x128xf32>
    %c0_22 = arith.constant 0 : index
    %c0_23 = arith.constant 0 : index
    %61 = vector.load %arg7[%c0_22, %c0_23] : memref<16x128xf32, #tpu.memory_space<vmem>>, vector<16x128xf32>
    tpu.vector_store %arg7[%c0_22, %c0_23], %60 {strides = array<i32>} : memref<16x128xf32, #tpu.memory_space<vmem>>, vector<16x128xf32>,
    %c0_24 = arith.constant 0 : index
    %c0_25 = arith.constant 0 : index
    %62 = vector.load %arg8[%c0_24, %c0_25] : memref<16x128xf32, #tpu.memory_space<vmem>>, vector<16x128xf32>
    %63 = arith.addf %62, %22 : vector<16x128xf32>
    %c0_26 = arith.constant 0 : index
    %c0_27 = arith.constant 0 : index
    %64 = vector.load %arg8[%c0_26, %c0_27] : memref<16x128xf32, #tpu.memory_space<vmem>>, vector<16x128xf32>
    tpu.vector_store %arg8[%c0_26, %c0_27], %63 {strides = array<i32>} : memref<16x128xf32, #tpu.memory_space<vmem>>, vector<16x128xf32>,
    %c0_i32_28 = arith.constant 0 : i32
    %65 = arith.cmpi eq, %arg1, %c0_i32_28 : i32
    %66 = arith.extui %65 : i1 to i32
    %c0_i32_29 = arith.constant 0 : i32
    %67 = arith.cmpi ne, %66, %c0_i32_29 : i32
    scf.if %67 {
      %c0_30 = arith.constant 0 : index
      %c0_31 = arith.constant 0 : index
      %68 = vector.load %arg5[%c0_30, %c0_31] : memref<16x128xf32, #tpu.memory_space<vmem>>, vector<16x128xf32>
      %cst_32 = arith.constant dense<0.000000e+00> : vector<128xf32>
      %69 = vector.multi_reduction <add>, %68, %cst_32 [0] : vector<16x128xf32> to vector<128xf32>
      %70 = vector.shape_cast %69 : vector<128xf32> to vector<1x128xf32>
      %c0_33 = arith.constant 0 : index
      %c0_34 = arith.constant 0 : index
      %71 = vector.load %arg6[%c0_33, %c0_34] : memref<16x128xf32, #tpu.memory_space<vmem>>, vector<16x128xf32>
      %cst_35 = arith.constant dense<0.000000e+00> : vector<128xf32>
      %72 = vector.multi_reduction <add>, %71, %cst_35 [0] : vector<16x128xf32> to vector<128xf32>
      %73 = vector.shape_cast %72 : vector<128xf32> to vector<1x128xf32>
      %c0_36 = arith.constant 0 : index
      %c0_37 = arith.constant 0 : index
      %74 = vector.load %arg7[%c0_36, %c0_37] : memref<16x128xf32, #tpu.memory_space<vmem>>, vector<16x128xf32>
      %cst_38 = arith.constant dense<0.000000e+00> : vector<128xf32>
      %75 = vector.multi_reduction <add>, %74, %cst_38 [0] : vector<16x128xf32> to vector<128xf32>
      %76 = vector.shape_cast %75 : vector<128xf32> to vector<1x128xf32>
      %c0_39 = arith.constant 0 : index
      %c0_40 = arith.constant 0 : index
      %77 = vector.load %arg8[%c0_39, %c0_40] : memref<16x128xf32, #tpu.memory_space<vmem>>, vector<16x128xf32>
      %cst_41 = arith.constant dense<0.000000e+00> : vector<128xf32>
      %78 = vector.multi_reduction <add>, %77, %cst_41 [0] : vector<16x128xf32> to vector<128xf32>
      %79 = vector.shape_cast %78 : vector<128xf32> to vector<1x128xf32>
      %80 = tpu.concatenate %70, %73, %76, %79 in 0 : vector<1x128xf32>, vector<1x128xf32>, vector<1x128xf32>, vector<1x128xf32> -> vector<4x128xf32>
      %81 = vector.shape_cast %80 : vector<4x128xf32> to vector<1x4x128xf32>
      %c0_42 = arith.constant 0 : index
      %c0_43 = arith.constant 0 : index
      %c0_44 = arith.constant 0 : index
      %82 = vector.load %arg4[%c0_42, %c0_43, %c0_44] : memref<1x4x128xf32, #tpu.memory_space<vmem>>, vector<1x4x128xf32>
      tpu.vector_store %arg4[%c0_42, %c0_43, %c0_44], %81 {strides = array<i32>} : memref<1x4x128xf32, #tpu.memory_space<vmem>>, vector<1x4x128xf32>,
    } else {
    }
    return
  }
  func.func @transform_0(%arg0: i32, %arg1: i32) -> (i32, i32) {
    %c1_i32 = arith.constant 1 : i32
    %0 = arith.muli %arg0, %c1_i32 : i32
    %1 = arith.addi %0, %arg1 : i32
    %c0_i32 = arith.constant 0 : i32
    %2 = arith.minsi %1, %c0_i32 : i32
    %c0_i32_0 = arith.constant 0 : i32
    %c0_i32_1 = arith.constant 0 : i32
    return %2, %c0_i32_0 : i32, i32
  }
  func.func @transform_1(%arg0: i32, %arg1: i32) -> (i32, i32) {
    %c1_i32 = arith.constant 1 : i32
    %0 = arith.muli %arg0, %c1_i32 : i32
    %1 = arith.addi %0, %arg1 : i32
    %c0_i32 = arith.constant 0 : i32
    %2 = arith.minsi %1, %c0_i32 : i32
    %c0_i32_0 = arith.constant 0 : i32
    %c0_i32_1 = arith.constant 0 : i32
    return %2, %c0_i32_0 : i32, i32
  }
  func.func @transform_2(%arg0: i32, %arg1: i32) -> (i32, i32, i32) {
    %c0_i32 = arith.constant 0 : i32
    %c0_i32_0 = arith.constant 0 : i32
    %c0_i32_1 = arith.constant 0 : i32
    return %arg0, %c0_i32, %c0_i32_0 : i32, i32, i32
  }
}

</mosaic_0001>

<llo_original>
// kernel: tpu_custom_call.1
$region0: #{tpu_custom_call.1}
  #allocation0 [shape = 'u32[]', space=smem, size = 0x4, offset = 0x4, fixed_abs, tag = 'smem constant byte address 0x4 - core index']
  #allocation1 [shape = 'u32[72,128]{1,0:T(1,128)}', space=vmem, size = 0x9000, scoped, tag = 'internal scratch']
  #allocation2 [shape = 'f32[16,128]{1,0:T(8,128)}', space=vmem, size = 0x2000, scoped, tag = 'scratch operand']
  #allocation3 [shape = 'f32[16,128]{1,0:T(8,128)}', space=vmem, size = 0x2000, scoped, tag = 'scratch operand']
  #allocation4 [shape = 'f32[16,128]{1,0:T(8,128)}', space=vmem, size = 0x2000, scoped, tag = 'scratch operand']
  #allocation5 [shape = 'f32[16,128]{1,0:T(8,128)}', space=vmem, size = 0x2000, scoped, tag = 'scratch operand']
  %s0 = inlined_call_operand.hbm [shape: f32[16,128], index: 0, kind: input, shape index: {}]
  %s1 = inlined_call_operand.hbm [shape: f32[16,128], index: 1, kind: input, shape index: {}]
  %s2 = inlined_call_operand.hbm [shape: f32[1,4,128], index: 2, kind: output, shape index: {}]
  %s3 = sld [smem:[#allocation0]]
  $region34: #{tpu_custom_call.1} parent=0
    _
  %s5 = ssub.s32 1, %s3
  %s6 = scalar_select 0, %s5, %s3
  $region1: #{tpu_custom_call.1} parent=0
    #allocation6 [shape = 'u8[8192]{0}', space=vmem, size = 0x2000, scoped, tag = 'input window, operand 0, single buffered']
    #allocation7 [shape = 's32[1]{0}', space=sflag, size = 0x4, scoped, tag = 'scoped memory for tpu_custom_call.1']
    #allocation8 [shape = 's32[1]{0}', space=sflag, size = 0x4, scoped, tag = 'scoped memory for tpu_custom_call.1']
    #allocation9 [shape = 'u8[8192]{0}', space=vmem, size = 0x2000, scoped, tag = 'input window, operand 1, single buffered']
    #allocation10 [shape = 's32[1]{0}', space=sflag, size = 0x4, scoped, tag = 'scoped memory for tpu_custom_call.1']
    #allocation11 [shape = 'u8[2048]{0}', space=vmem, size = 0x800, scoped, tag = 'output window, operand 0, single buffered']
    %7 = vsyncpa [#allocation7], 0
    %8 = vsyncpa [#allocation10], 0
    %9 = vsyncpa [#allocation8], 0
    // Predicated region
    $region2: #{tpu_custom_call.1} parent=1 // pred_check
      _
    $region3: #{tpu_custom_call.1} parent=1 // pred_check_branch
      %11 = sbr.rel (0) target = $region5
    $region4: #{tpu_custom_call.1} parent=1 // pred_region
      %s12 = sadd.s32 0, 0
      %p13 = scmp.lt.s32.totalorder %s12, 0
      %s14 = scalar_select %p13, %s12, 0
      %s15 = smul.u32 2, %s14
      %17 = vsyncadd [#allocation7], 0
      %s18 = smul.addr %s15, 8
      %s19 = scalar_lea.hbm %s0, %s18
      %s20 = sshll.u32 %s19, 4
      %s21 = int_to_ptr.hbm [resolvable:$true] %s20
      %s22 = sshll.u32 [#allocation6], 4
      %s23 = int_to_ptr.vmem [resolvable:$true] %s22
      %28 = dma.hbm_to_vmem [thread:$0]  %s21, 256, %s23, [#allocation7], 128, 128, 8
    $region5: #{tpu_custom_call.1} parent=1 // pred_fallthru
      _
    // Predicated region
    $region6: #{tpu_custom_call.1} parent=1 // pred_check
      _
    $region7: #{tpu_custom_call.1} parent=1 // pred_check_branch
      %30 = sbr.rel (0) target = $region9
    $region8: #{tpu_custom_call.1} parent=1 // pred_region
      %s31 = sadd.s32 0, 0
      %p32 = scmp.lt.s32.totalorder %s31, 0
      %s33 = scalar_select %p32, %s31, 0
      %s34 = smul.u32 2, %s33
      %36 = vsyncadd [#allocation10], 0
      %s37 = smul.addr %s34, 8
      %s38 = scalar_lea.hbm %s1, %s37
      %s39 = sshll.u32 %s38, 4
      %s40 = int_to_ptr.hbm [resolvable:$true] %s39
      %s41 = sshll.u32 [#allocation9], 4
      %s42 = int_to_ptr.vmem [resolvable:$true] %s41
      %47 = dma.hbm_to_vmem [thread:$0]  %s40, 256, %s42, [#allocation10], 128, 128, 8
    $region9: #{tpu_custom_call.1} parent=1 // pred_fallthru
      _
    // Predicated region
    $region10: #{tpu_custom_call.1} parent=1 // pred_check
      _
    $region11: #{tpu_custom_call.1} parent=1 // pred_check_branch
      %49 = sbr.rel (0) target = $region13
    $region12: #{tpu_custom_call.1} parent=1 // pred_region
      %51 = dma.done [#allocation7], 256
    $region13: #{tpu_custom_call.1} parent=1 // pred_fallthru
      _
    // Predicated region
    $region14: #{tpu_custom_call.1} parent=1 // pred_check
      _
    $region15: #{tpu_custom_call.1} parent=1 // pred_check_branch
      %53 = sbr.rel (0) target = $region17
    $region16: #{tpu_custom_call.1} parent=1 // pred_region
      %55 = dma.done [#allocation10], 256
    $region17: #{tpu_custom_call.1} parent=1 // pred_fallthru
      _
    %s56 = sadd.s32 0, 0
    %p57 = scmp.lt.s32.totalorder %s56, 0
    %s58 = scalar_select %p57, %s56, 0
    %s59 = smul.u32 2, %s58
    %s60 = sadd.s32 0, 0
    %p61 = scmp.lt.s32.totalorder %s60, 0
    %s62 = scalar_select %p61, %s60, 0
    %s63 = smul.u32 2, %s62
    %p64 = scmp.eq.s32.totalorder 0, 0
    // Predicated region
    $region18: #{tpu_custom_call.1} parent=1 // pred_check
      %p65 = pneg %p64
    $region19: #{tpu_custom_call.1} parent=1 // pred_check_branch
      %67 = sbr.rel (%p65) target = $region21
    $region20: #{tpu_custom_call.1} parent=1 // pred_region
      %68 = vst [vmem:[#allocation2] sm:$0xff] 0.0
      %69 = vst [vmem:[#allocation2 + $0x8] sm:$0xff] 0.0
      %70 = vst [vmem:[#allocation3] sm:$0xff] 0.0
      %71 = vst [vmem:[#allocation3 + $0x8] sm:$0xff] 0.0
      %72 = vst [vmem:[#allocation4] sm:$0xff] 0.0
      %73 = vst [vmem:[#allocation4 + $0x8] sm:$0xff] 0.0
      %74 = vst [vmem:[#allocation5] sm:$0xff] 0.0
      %75 = vst [vmem:[#allocation5 + $0x8] sm:$0xff] 0.0
    $region21: #{tpu_custom_call.1} parent=1 // pred_fallthru
      _
    %s76 = sadd.s32 0, 0
    %v77 = vlaneseq
    %v78 = vshrl.u32 %v77, 7
    %v79 = vadd.s32 %v78, 8
    %v80 = vlaneseq
    %v81 = vand.u32 %v80, 127
    %s82 = smul.u32 %s76, 16
    %v83 = vstv %s82
    %v84 = vadd.s32 %v83, %v78
    %v85 = vadd.s32 %v83, %v79
    %v86 = vmul.u32 %v84, 128
    %v87 = vmul.u32 %v85, 128
    %v88 = vadd.s32 %v86, %v81
    %v89 = vadd.s32 %v87, %v81
    %vm90 = vcmp.lt.s32.totalorder %v88, 2048
    %vm91 = vcmp.lt.s32.totalorder %v89, 2048
    %v92 = vsel %vm90, 1, 0
    %v93 = vsel %vm91, 1, 0
    %v94 = vcvt.s32.f32 %v92
    %v95 = vcvt.s32.f32 %v93
    %v96 = vld [vmem:[#allocation6] sm:$0xff]
    %v97 = vld [vmem:[#allocation6 + $0x8] sm:$0xff]
    %v98 = vsel %vm90, %v96, 0.0
    %v99 = vsel %vm91, %v97, 0.0
    %v100 = vld [vmem:[#allocation9] sm:$0xff]
    %v101 = vld [vmem:[#allocation9 + $0x8] sm:$0xff]
    %v102 = vsel %vm90, %v100, 0.0
    %v103 = vsel %vm91, %v101, 0.0
    %v104 = vand.u32 2147483647, %v98
    %v105 = vand.u32 2147483647, %v99
    %v106 = vsub.f32 0.0, %v104
    %v107 = vsub.f32 0.0, %v105
    %v108 = vmul.f32 %v106, 1.442695
    %v109 = vpow.pop %v108
    %v110 = vmul.f32 %v107, 1.442695
    %v111 = vpow.pop %v110
    %v112 = vmul.f32 %v98, %v102
    %v113 = vmul.f32 %v99, %v103
    %v114 = vsub.f32 %v98, %v112
    %v115 = vsub.f32 %v99, %v113
    %v116 = vsub.f32 0.0, %v98
    %v117 = vsub.f32 0.0, %v99
    %v118 = vmax.f32 %v116, 0.0
    %v119 = vmax.f32 %v117, 0.0
    %v120 = vadd.f32 %v114, %v118
    %v121 = vadd.f32 %v115, %v119
    %v122 = vadd.f32 %v109, 1.0
    %v123 = vlog2.pop %v122
    %v124 = vmul.f32 %v123, 0.6931472
    %v125 = vmul.f32 -0.5, %v109
    %v126 = vadd.f32 %v125, 1.0
    %v127 = vmul.f32 %v126, %v109
    %v128 = vand.u32 2147483647, %v109
    %vm129 = vcmp.lt.f32.partialorder %v128, 0.0004427343
    %v130 = vsel %vm129, %v127, %v124
    %v131 = vadd.f32 %v111, 1.0
    %v132 = vlog2.pop %v131
    %v133 = vmul.f32 %v132, 0.6931472
    %v134 = vmul.f32 -0.5, %v111
    %v135 = vadd.f32 %v134, 1.0
    %v136 = vmul.f32 %v135, %v111
    %v137 = vand.u32 2147483647, %v111
    %vm138 = vcmp.lt.f32.partialorder %v137, 0.0004427343
    %v139 = vsel %vm138, %v136, %v133
    %v140 = vadd.f32 %v120, %v130
    %v141 = vadd.f32 %v121, %v139
    %vm142 = vcmp.ge.f32.partialorder %v98, 0.0
    %vm143 = vcmp.ge.f32.partialorder %v99, 0.0
    %v144 = vsel %vm142, 1.0, %v109
    %v145 = vsel %vm143, 1.0, %v111
    %v146 = vadd.f32 %v109, 1.0
    %v147 = vadd.f32 %v111, 1.0
    %v148 = vrcp.pop %v146
    %v149 = vmul.f32 %v146, %v148
    %v150 = vsub.f32 1.0, %v149
    %v151 = vmul.f32 %v148, %v150
    %v152 = vadd.f32 %v148, %v151
    %vm153 = vweird.f32 %v146
    %vm154 = vweird.f32 %v148
    %vm155 = vmor %vm153, %vm154
    %v156 = vsel %vm155, %v148, %v152
    %v157 = vand.u32 2147483647, %v146
    %vm158 = vcmp.eq.f32.partialorder %v157, 8.507059e+37
    %v159 = vand.u32 %v146, 2147483648
    %v160 = vor.u32 1.1754944e-38, %v159
    %v161 = vsel %vm158, %v160, %v156
    %v162 = vmul.f32 %v144, %v161
    %v163 = vrcp.pop %v147
    %v164 = vmul.f32 %v147, %v163
    %v165 = vsub.f32 1.0, %v164
    %v166 = vmul.f32 %v163, %v165
    %v167 = vadd.f32 %v163, %v166
    %vm168 = vweird.f32 %v147
    %vm169 = vweird.f32 %v163
    %vm170 = vmor %vm168, %vm169
    %v171 = vsel %vm170, %v163, %v167
    %v172 = vand.u32 2147483647, %v147
    %vm173 = vcmp.eq.f32.partialorder %v172, 8.507059e+37
    %v174 = vand.u32 %v147, 2147483648
    %v175 = vor.u32 1.1754944e-38, %v174
    %v176 = vsel %vm173, %v175, %v171
    %v177 = vmul.f32 %v145, %v176
    %v178 = vadd.f32 %v162, %v102
    %v179 = vadd.f32 %v177, %v103
    %v180 = vmul.f32 %v102, 2.0
    %v181 = vmul.f32 %v103, 2.0
    %v182 = vmul.f32 %v180, %v162
    %v183 = vmul.f32 %v181, %v177
    %v184 = vsub.f32 %v178, %v182
    %v185 = vsub.f32 %v179, %v183
    %v186 = vmul.f32 %v184, %v184
    %v187 = vmul.f32 %v185, %v185
    %v188 = vmul.f32 %v186, %v140
    %v189 = vmul.f32 %v187, %v141
    %v190 = vmul.f32 %v188, %v94
    %v191 = vmul.f32 %v189, %v95
    %v192 = vmul.f32 %v162, %v94
    %v193 = vmul.f32 %v177, %v95
    %v194 = vld [vmem:[#allocation2] sm:$0xff]
    %v195 = vld [vmem:[#allocation2 + $0x8] sm:$0xff]
    %v196 = vadd.f32 %v194, %v190
    %v197 = vadd.f32 %v195, %v191
    %198 = vst [vmem:[#allocation2] sm:$0xff] %v196
    %199 = vst [vmem:[#allocation2 + $0x8] sm:$0xff] %v197
    %v200 = vld [vmem:[#allocation3] sm:$0xff]
    %v201 = vld [vmem:[#allocation3 + $0x8] sm:$0xff]
    %v202 = vmul.f32 %v192, %v102
    %v203 = vmul.f32 %v193, %v103
    %v204 = vadd.f32 %v200, %v202
    %v205 = vadd.f32 %v201, %v203
    %206 = vst [vmem:[#allocation3] sm:$0xff] %v204
    %207 = vst [vmem:[#allocation3 + $0x8] sm:$0xff] %v205
    %v208 = vld [vmem:[#allocation4] sm:$0xff]
    %v209 = vld [vmem:[#allocation4 + $0x8] sm:$0xff]
    %v210 = vadd.f32 %v208, %v192
    %v211 = vadd.f32 %v209, %v193
    %212 = vst [vmem:[#allocation4] sm:$0xff] %v210
    %213 = vst [vmem:[#allocation4 + $0x8] sm:$0xff] %v211
    %v214 = vld [vmem:[#allocation5] sm:$0xff]
    %v215 = vld [vmem:[#allocation5 + $0x8] sm:$0xff]
    %v216 = vadd.f32 %v214, %v102
    %v217 = vadd.f32 %v215, %v103
    %218 = vst [vmem:[#allocation5] sm:$0xff] %v216
    %219 = vst [vmem:[#allocation5 + $0x8] sm:$0xff] %v217
    // Predicated region
    $region22: #{tpu_custom_call.1} parent=1 // pred_check
      %p220 = pneg %p64
    $region23: #{tpu_custom_call.1} parent=1 // pred_check_branch
      %222 = sbr.rel (%p220) target = $region25
    $region24: #{tpu_custom_call.1} parent=1 // pred_region
      %v223 = vld [vmem:[#allocation2] sm:$0xff]
      %v224 = vld [vmem:[#allocation2 + $0x8] sm:$0xff]
      %v225 = vadd.f32 %v223, %v224
      %v226 = vrot.slane %v225, 4
      %v227 = vadd.f32 %v225, %v226
      %v228 = vrot.slane %v227, 2
      %v229 = vadd.f32 %v227, %v228
      %v230 = vrot.slane %v229, 1
      %v231 = vadd.f32 %v229, %v230
      %v232 = vld [vmem:[#allocation3] sm:$0xff]
      %v233 = vld [vmem:[#allocation3 + $0x8] sm:$0xff]
      %v234 = vadd.f32 %v232, %v233
      %v235 = vrot.slane %v234, 4
      %v236 = vadd.f32 %v234, %v235
      %v237 = vrot.slane %v236, 2
      %v238 = vadd.f32 %v236, %v237
      %v239 = vrot.slane %v238, 1
      %v240 = vadd.f32 %v238, %v239
      %v241 = vld [vmem:[#allocation4] sm:$0xff]
      %v242 = vld [vmem:[#allocation4 + $0x8] sm:$0xff]
      %v243 = vadd.f32 %v241, %v242
      %v244 = vrot.slane %v243, 4
      %v245 = vadd.f32 %v243, %v244
      %v246 = vrot.slane %v245, 2
      %v247 = vadd.f32 %v245, %v246
      %v248 = vrot.slane %v247, 1
      %v249 = vadd.f32 %v247, %v248
      %v250 = vld [vmem:[#allocation5] sm:$0xff]
      %v251 = vld [vmem:[#allocation5 + $0x8] sm:$0xff]
      %v252 = vadd.f32 %v250, %v251
      %v253 = vrot.slane %v252, 4
      %v254 = vadd.f32 %v252, %v253
      %v255 = vrot.slane %v254, 2
      %v256 = vadd.f32 %v254, %v255
      %v257 = vrot.slane %v256, 1
      %v258 = vadd.f32 %v256, %v257
      %vm259 = vcmask 1040384
      %v260 = vsel %vm259, %v231, %v240
      %vm261 = vcmask 1041408
      %v262 = vsel %vm261, %v260, %v249
      %vm263 = vcmask 1042432
      %v264 = vsel %vm263, %v262, %v258
      %265 = vst [vmem:[#allocation11] sm:$0xf] %v264
    $region25: #{tpu_custom_call.1} parent=1 // pred_fallthru
      _
    // Predicated region
    $region26: #{tpu_custom_call.1} parent=1 // pred_check
      _
    $region27: #{tpu_custom_call.1} parent=1 // pred_check_branch
      %267 = sbr.rel (0) target = $region29
    $region28: #{tpu_custom_call.1} parent=1 // pred_region
      %269 = vsyncadd [#allocation8], 0
      %s271 = sshll.u32 [#allocation11], 4
      %s272 = int_to_ptr.vmem [resolvable:$true] %s271
      %s273 = sshll.u32 %s2, 4
      %s274 = int_to_ptr.hbm [resolvable:$true] %s273
      %276 = dma.vmem_to_hbm [thread:$0]  %s272, 64, %s274, [#allocation8]
    $region29: #{tpu_custom_call.1} parent=1 // pred_fallthru
      _
    // Predicated region
    $region30: #{tpu_custom_call.1} parent=1 // pred_check
      _
    $region31: #{tpu_custom_call.1} parent=1 // pred_check_branch
      %278 = sbr.rel (0) target = $region33
    $region32: #{tpu_custom_call.1} parent=1 // pred_region
      %280 = dma.done [#allocation8], 64
    $region33: #{tpu_custom_call.1} parent=1 // pred_fallthru
      _
    %281 = vsyncpa [#allocation7], 1
    %282 = vsyncpa [#allocation10], 1
    %283 = vsyncpa [#allocation8], 1

</llo_original>
